<compile_context>
chip_gen: v5e
topology: v5e:2x2
jax: 0.10.0
libtpu: 0.0.40
codegen_flags: <defaults>
</compile_context>

<pallas_src>
import functools
import math

import jax
import jax.numpy as jnp
from jax.experimental import pallas as pl
from jax.experimental.pallas import tpu as pltpu


def _round_up(x, m):
    return ((x + m - 1) // m) * m


# ---------------------------------------------------------------------------
# Kernel 1: M/N-tiled linear  y = x @ w + b  (f32 accumulation)
# ---------------------------------------------------------------------------
def _linear_kernel(x_ref, w_ref, b_ref, o_ref):
    y = jnp.dot(x_ref[...], w_ref[...], preferred_element_type=jnp.float32)
    o_ref[...] = (y + b_ref[...].astype(jnp.float32)).astype(o_ref.dtype)


def _pick_tn(n, max_tn=512):
    # Full N if small / not lane aligned, else 128-multiple tiles (256 on v6e+).
    if n % 128 != 0 or n <= max_tn:
        return n
    for tn in (512, 384, 256, 128):
        if n % tn == 0:
            return tn
    return n


def linear_pallas(x2d, w, b_row, *, tm=256):
    """x2d: (M, K); w: (K, N) pre-transposed; b_row: (1, N) float32."""
    M, K = x2d.shape
    N = w.shape[1]
    tm = min(tm, _round_up(M, 8))
    tn = _pick_tn(N)
    # Weight-tile axis outermost so each (K, tn) weight slab is fetched once
    # per sweep over the row tiles.  No jnp.pad / output slicing: pl.cdiv grid
    # with Pallas handling the ragged edge.
    grid = (pl.cdiv(N, tn), pl.cdiv(M, tm))
    return pl.pallas_call(
        _linear_kernel,
        out_shape=jax.ShapeDtypeStruct((M, N), x2d.dtype),
        grid_spec=pltpu.PrefetchScalarGridSpec(
            num_scalar_prefetch=0,
            grid=grid,
            in_specs=[
                pl.BlockSpec((tm, K), lambda j, i: (i, 0)),    # activation rows
                pl.BlockSpec((K, tn), lambda j, i: (0, j)),    # weight column tile
                pl.BlockSpec((1, tn), lambda j, i: (0, j)),    # bias column tile
            ],
            out_specs=pl.BlockSpec((tm, tn), lambda j, i: (i, j)),
        ),
        compiler_params=pltpu.CompilerParams(
            dimension_semantics=("parallel", "parallel")),
    )(x2d, w, b_row)


# ---------------------------------------------------------------------------
# Kernel 2: fused RoPE + flash attention over KV tiles, all heads per program
# ---------------------------------------------------------------------------
def _attn_kernel(q_ref, k_ref, v_ref, cos_q_ref, sin_q_ref, cos_k_ref,
                 sin_k_ref, rot_ref, o_ref, m_scr, l_scr, acc_scr, *,
                 scale, causal, seq_len):
    tq, nhead, _ = q_ref.shape
    tkv = k_ref.shape[0]
    qi = pl.program_id(1)
    kv = pl.program_id(2)
    nkv = pl.num_programs(2)

    @pl.when(kv == 0)
    def _init():
        m_scr[...] = jnp.full_like(m_scr, -jnp.inf)
        l_scr[...] = jnp.zeros_like(l_scr)
        acc_scr[...] = jnp.zeros_like(acc_scr)

    def _compute():
        dot_dtype = q_ref.dtype
        cos_q = cos_q_ref[...]
        sin_q = sin_q_ref[...]
        cos_k = cos_k_ref[...]
        sin_k = sin_k_ref[...]
        rot = rot_ref[...]

        # In-kernel mask (no (S,S) int32 mask DMA, no cmp against a loaded mask).
        row = qi * tq + jax.lax.broadcasted_iota(jnp.int32, (tq, tkv), 0)
        col = kv * tkv + jax.lax.broadcasted_iota(jnp.int32, (tq, tkv), 1)
        masked = None
        if causal:
            masked = col > row
        if seq_len % tkv != 0:
            oob = col >= seq_len
            masked = oob if masked is None else jnp.logical_or(masked, oob)

        for h in range(nhead):
            # Rotary embedding in f32.  (x @ rot) swaps each interleaved
            # (even, odd) pair with sign, so x*cos + (x@rot)*sin is exactly
            # the complex rotation of each pair (position 0 row is identity).
            q_h = q_ref[:, h, :].astype(jnp.float32)
            k_h = k_ref[:, h, :].astype(jnp.float32)
            q_h = q_h * cos_q + jnp.dot(
                q_h, rot, preferred_element_type=jnp.float32) * sin_q
            k_h = k_h * cos_k + jnp.dot(
                k_h, rot, preferred_element_type=jnp.float32) * sin_k
            # 1/sqrt(Dh) folded into q: S*Dh multiplies instead of S*S.
            q_h = (q_h * scale).astype(dot_dtype)
            k_h = k_h.astype(dot_dtype)

            s = jax.lax.dot_general(
                q_h, k_h, (((1,), (1,)), ((), ())),
                preferred_element_type=jnp.float32)          # (tq, tkv)
            if masked is not None:
                s = jnp.where(masked, -1e9, s)               # masked_fill(mask==1, -1e9)

            m_prev = m_scr[h]                                # (tq, 1)
            m_new = jnp.maximum(m_prev, jnp.max(s, axis=-1, keepdims=True))
            alpha = jnp.exp(m_prev - m_new)
            p = jnp.exp(s - m_new)
            l_scr[h] = alpha * l_scr[h] + jnp.sum(p, axis=-1, keepdims=True)
            acc_scr[h] = alpha * acc_scr[h] + jnp.dot(
                p.astype(dot_dtype), v_ref[:, h, :],
                preferred_element_type=jnp.float32)
            m_scr[h] = m_new

    if causal:
        # Skip KV tiles that lie entirely above the causal diagonal.
        pl.when(kv * tkv <= qi * tq + (tq - 1))(_compute)
    else:
        _compute()

    @pl.when(kv == nkv - 1)
    def _flush():
        # Deferred softmax normalization (one divide per output element) and
        # head re-interleave -> a single lane-dense (tq, H*Dh) store so the
        # output is already in (B, S, d_model) layout.
        outs = [acc_scr[h] / l_scr[h] for h in range(nhead)]
        o_ref[...] = jnp.concatenate(outs, axis=-1).astype(o_ref.dtype)


def _pair_swap_matrix(dh):
    """(dh, dh) matrix P with (x @ P)[2t] = -x[2t+1], (x @ P)[2t+1] = x[2t]."""
    i = jnp.arange(dh)
    src = jnp.where(i % 2 == 0, i + 1, i - 1)
    sign = jnp.where(i % 2 == 0, -1.0, 1.0).astype(jnp.float32)
    return jnp.zeros((dh, dh), jnp.float32).at[src, i].set(sign)


def attention_pallas(qkv5, cos_full, sin_full, *, scale, causal=True,
                     tq=256, tkv=256):
    """qkv5: (B, S, 3, H, Dh) free view of the fused QKV projection output.

    Returns (B, S, H*Dh) with heads already folded back into d_model order.
    """
    B, S, three, H, Dh = qkv5.shape
    assert three == 3
    tq = min(tq, _round_up(S, 8))
    tkv = min(tkv, _round_up(S, 8))
    nq = pl.cdiv(S, tq)
    nkv = pl.cdiv(S, tkv)
    rot = _pair_swap_matrix(Dh)
    kern = functools.partial(_attn_kernel, scale=scale, causal=causal,
                             seq_len=S)

    return pl.pallas_call(
        kern,
        out_shape=jax.ShapeDtypeStruct((B, S, H * Dh), qkv5.dtype),
        grid_spec=pltpu.PrefetchScalarGridSpec(
            num_scalar_prefetch=0,
            grid=(B, nq, nkv),
            in_specs=[
                # q / k / v blocks read straight from the packed QKV output.
                pl.BlockSpec((None, tq, None, H, Dh),
                             lambda b, i, j: (b, i, 0, 0, 0)),
                pl.BlockSpec((None, tkv, None, H, Dh),
                             lambda b, i, j: (b, j, 1, 0, 0)),
                pl.BlockSpec((None, tkv, None, H, Dh),
                             lambda b, i, j: (b, j, 2, 0, 0)),
                # RoPE tables (tiny) for the q rows and k rows of this program.
                pl.BlockSpec((tq, Dh), lambda b, i, j: (i, 0)),
                pl.BlockSpec((tq, Dh), lambda b, i, j: (i, 0)),
                pl.BlockSpec((tkv, Dh), lambda b, i, j: (j, 0)),
                pl.BlockSpec((tkv, Dh), lambda b, i, j: (j, 0)),
                # Resident pair-swap matrix for the in-kernel rotary embedding.
                pl.BlockSpec((Dh, Dh), lambda b, i, j: (0, 0)),
            ],
            out_specs=pl.BlockSpec((None, tq, H * Dh),
                                   lambda b, i, j: (b, i, 0)),
            scratch_shapes=[
                pltpu.VMEM((H, tq, 1), jnp.float32),    # running max
                pltpu.VMEM((H, tq, 1), jnp.float32),    # running denominator
                pltpu.VMEM((H, tq, Dh), jnp.float32),   # running output acc
            ],
        ),
        compiler_params=pltpu.CompilerParams(
            dimension_semantics=("parallel", "parallel", "arbitrary")),
    )(qkv5, qkv5, qkv5, cos_full, sin_full, cos_full, sin_full, rot)


# ---------------------------------------------------------------------------
# One-time parameter / table prep (hoists transposes, concat, RoPE layout)
# ---------------------------------------------------------------------------
def prepare_mha_params(wq, bq, wk, bk, wv, bv, wo, bo, *, dtype=jnp.float32):
    d_model = wq.shape[1]
    return dict(
        w_qkv=jnp.concatenate([wq.T, wk.T, wv.T], axis=1).astype(dtype),
        b_qkv=jnp.concatenate([bq, bk, bv]).reshape(1, 3 * d_model)
        .astype(jnp.float32),
        w_o=wo.T.astype(dtype),
        b_o=bo.reshape(1, d_model).astype(jnp.float32),
    )


def prepare_rope_full(cos, sin):
    """cos/sin: (S-1, Dh//2) tables for rotated positions 1..S-1.

    Returns (S, Dh) full-width f32 tables with each frequency duplicated over
    its interleaved (even, odd) lane pair; row 0 is the identity rotation
    (position 0 is excluded from RoPE in the reference module)."""
    ones = jnp.ones((1, cos.shape[1]), jnp.float32)
    zeros = jnp.zeros((1, sin.shape[1]), jnp.float32)
    c = jnp.concatenate([ones, cos.astype(jnp.float32)], axis=0)
    s = jnp.concatenate([zeros, sin.astype(jnp.float32)], axis=0)
    return jnp.repeat(c, 2, axis=1), jnp.repeat(s, 2, axis=1)


def mha_forward(x, params, cos_full, sin_full, *, nhead, causal=True,
                tm=256, tq=256, tkv=256):
    B, S, D = x.shape
    Dh = D // nhead
    M = B * S
    x = x.astype(params["w_qkv"].dtype)

    # 1) fused QKV projection (single tiled GEMM, no pad/slice glue)
    qkv = linear_pallas(x.reshape(M, D), params["w_qkv"], params["b_qkv"],
                        tm=tm)
    # free view: columns already ordered (qkv, head, head_dim)
    qkv5 = qkv.reshape(B, S, 3, nhead, Dh)

    # 2+3) fused RoPE + flash attention; output already in (B, S, D) layout
    attn = attention_pallas(qkv5, cos_full, sin_full,
                            scale=1.0 / math.sqrt(Dh), causal=causal,
                            tq=tq, tkv=tkv)

    # 4) output projection; dropout is identity in eval mode
    out = linear_pallas(attn.reshape(M, D), params["w_o"], params["b_o"],
                        tm=tm)
    return out.reshape(B, S, D)


# ---------------------------------------------------------------------------
# Pure-JAX reference mirroring the PyTorch forward
# ---------------------------------------------------------------------------
def _rope_ref(x, cos, sin):
    """x: (B, S', H, Dh); cos/sin: (S', Dh//2). Interleaved-pair rotation."""
    xr = x[..., 0::2]
    xi = x[..., 1::2]
    c = cos[None, :, None, :]
    s = sin[None, :, None, :]
    yr = xr * c - xi * s
    yi = xr * s + xi * c
    return jnp.stack([yr, yi], axis=-1).reshape(x.shape).astype(x.dtype)


def mha_ref(x, wq, bq, wk, bk, wv, bv, wo, bo, cos, sin, mask, nhead):
    B, S, D = x.shape
    Dh = D // nhead
    q = (x @ wq.T + bq).reshape(B, S, nhead, Dh)
    k = (x @ wk.T + bk).reshape(B, S, nhead, Dh)
    v = (x @ wv.T + bv).reshape(B, S, nhead, Dh).transpose(0, 2, 1, 3)
    q = jnp.concatenate([q[:, :1], _rope_ref(q[:, 1:], cos, sin)], axis=1)
    k = jnp.concatenate([k[:, :1], _rope_ref(k[:, 1:], cos, sin)], axis=1)
    qh = q.transpose(0, 2, 1, 3)
    kh = k.transpose(0, 2, 1, 3)
    a = jnp.einsum("bhqd,bhkd->bhqk", qh, kh) / math.sqrt(Dh)
    a = jnp.where(mask[None, None] == 1, -1e9, a)
    a = jax.nn.softmax(a, axis=-1)
    o = jnp.einsum("bhqk,bhkd->bhqd", a, v)
    o = o.transpose(0, 2, 1, 3).reshape(B, S, D)
    return o @ wo.T + bo


if __name__ == "__main__":
    # Small shapes consistent with the module: batch=2, seq=8, d_model=32, nhead=4
    batch, seq, d_model, nhead = 2, 8, 32, 4
    head_dim = d_model // nhead

    key = jax.random.PRNGKey(0)
    kx, k1, k2, k3, k4, k5, k6, k7, k8 = jax.random.split(key, 9)

    x = jax.random.normal(kx, (batch, seq, d_model), dtype=jnp.float32)

    lim = 1.0 / math.sqrt(d_model)

    def u(kk, shape):
        return jax.random.uniform(kk, shape, minval=-lim, maxval=lim,
                                  dtype=jnp.float32)

    wq, bq = u(k1, (d_model, d_model)), u(k2, (d_model,))
    wk, bk = u(k3, (d_model, d_model)), u(k4, (d_model,))
    wv, bv = u(k5, (d_model, d_model)), u(k6, (d_model,))
    wo, bo = u(k7, (d_model, d_model)), u(k8, (d_model,))

    # RoPE tables for positions 0..S-2 (torch code rotates tokens 1..S-1).
    inv_freq = 1.0 / (10000.0 ** (jnp.arange(0, head_dim, 2,
                                              dtype=jnp.float32) / head_dim))
    t = jnp.arange(seq - 1, dtype=jnp.float32)
    ang = jnp.outer(t, inv_freq)                      # (S-1, Dh/2)
    cos, sin = jnp.cos(ang), jnp.sin(ang)

    # Causal mask (reference only; the kernel builds it in-kernel from iota).
    mask = jnp.triu(jnp.ones((seq, seq), dtype=jnp.int32), k=1)

    cos_full, sin_full = prepare_rope_full(cos, sin)
    ref = mha_ref(x, wq, bq, wk, bk, wv, bv, wo, bo, cos, sin, mask, nhead)

    # ---- f32 path (tight tolerance vs. the PyTorch-equivalent reference) ----
    params = prepare_mha_params(wq, bq, wk, bk, wv, bv, wo, bo,
                                dtype=jnp.float32)
    out = mha_forward(x, params, cos_full, sin_full, nhead=nhead, causal=True)
    out = jax.block_until_ready(out)
    assert out.shape == (batch, seq, d_model)
    err = jnp.max(jnp.abs(out - ref))
    assert jnp.allclose(out, ref, atol=2e-4, rtol=2e-4), \
        f"f32 mismatch: max abs err={err}"

    # ---- bf16 MXU path (f32 accumulation + f32 softmax/RoPE), loose tol ----
    params_bf16 = prepare_mha_params(wq, bq, wk, bk, wv, bv, wo, bo,
                                     dtype=jnp.bfloat16)
    out_bf16 = mha_forward(x, params_bf16, cos_full, sin_full, nhead=nhead,
                           causal=True)
    out_bf16 = jax.block_until_ready(out_bf16).astype(jnp.float32)
    err_bf = jnp.max(jnp.abs(out_bf16 - ref))
    assert jnp.allclose(out_bf16, ref, atol=5e-2, rtol=5e-2), \
        f"bf16 mismatch: max abs err={err_bf}"

    print("KERNEL_OK")
</pallas_src>

<mosaic_0001>
module attributes {stable_mosaic.version = 11 : i64} {
  func.func @_linear_kernel(%arg0: i32, %arg1: i32, %arg2: memref<16x32xf32, #tpu.memory_space<vmem>>, %arg3: memref<32x96xf32, #tpu.memory_space<vmem>>, %arg4: memref<1x96xf32, #tpu.memory_space<vmem>>, %arg5: memref<16x96xf32, #tpu.memory_space<vmem>>) attributes {dimension_semantics = [#tpu.dimension_semantics<parallel>, #tpu.dimension_semantics<parallel>], iteration_bounds = array<i64: 1, 1>, scalar_prefetch = 0 : i64, scratch_operands = 0 : i64, tpu.core_type = #tpu.core_type<tc>, window_params = [{transform_indices = @transform_0, window_bounds = array<i64: 16, 32>}, {transform_indices = @transform_1, window_bounds = array<i64: 32, 96>}, {transform_indices = @transform_2, window_bounds = array<i64: 1, 96>}, {transform_indices = @transform_3, window_bounds = array<i64: 16, 96>}]} {
    %c0 = arith.constant 0 : index
    %c0_0 = arith.constant 0 : index
    %0 = vector.load %arg2[%c0, %c0_0] : memref<16x32xf32, #tpu.memory_space<vmem>>, vector<16x32xf32>
    %c0_1 = arith.constant 0 : index
    %c0_2 = arith.constant 0 : index
    %1 = vector.load %arg3[%c0_1, %c0_2] : memref<32x96xf32, #tpu.memory_space<vmem>>, vector<32x96xf32>
    %cst = arith.constant dense<0.000000e+00> : vector<16x96xf32>
    %2 = tpu.matmul %0, %1, %cst {dimension_numbers = #tpu.dot_dimension_numbers<[1], [0], [0], [1], [0, 0, 1, 1], [], []>} : vector<16x32xf32>, vector<32x96xf32>, vector<16x96xf32> -> vector<16x96xf32>
    %c0_3 = arith.constant 0 : index
    %c0_4 = arith.constant 0 : index
    %3 = vector.load %arg4[%c0_3, %c0_4] : memref<1x96xf32, #tpu.memory_space<vmem>>, vector<1x96xf32>
    %4 = vector.broadcast %3 : vector<1x96xf32> to vector<16x96xf32>
    %5 = arith.addf %2, %4 : vector<16x96xf32>
    %c0_5 = arith.constant 0 : index
    %c0_6 = arith.constant 0 : index
    %6 = vector.load %arg5[%c0_5, %c0_6] : memref<16x96xf32, #tpu.memory_space<vmem>>, vector<16x96xf32>
    tpu.vector_store %arg5[%c0_5, %c0_6], %5 {strides = array<i32>} : memref<16x96xf32, #tpu.memory_space<vmem>>, vector<16x96xf32>,
    return
  }
  func.func @transform_0(%arg0: i32, %arg1: i32) -> (i32, i32) {
    %c0_i32 = arith.constant 0 : i32
    %c0_i32_0 = arith.constant 0 : i32
    return %arg1, %c0_i32 : i32, i32
  }
  func.func @transform_1(%arg0: i32, %arg1: i32) -> (i32, i32) {
    %c0_i32 = arith.constant 0 : i32
    %c0_i32_0 = arith.constant 0 : i32
    return %c0_i32, %arg0 : i32, i32
  }
  func.func @transform_2(%arg0: i32, %arg1: i32) -> (i32, i32) {
    %c0_i32 = arith.constant 0 : i32
    %c0_i32_0 = arith.constant 0 : i32
    return %c0_i32, %arg0 : i32, i32
  }
  func.func @transform_3(%arg0: i32, %arg1: i32) -> (i32, i32) {
    %c0_i32 = arith.constant 0 : i32
    return %arg1, %arg0 : i32, i32
  }
}

</mosaic_0001>

<llo_original>
// kernel: tpu_custom_call.1
$region0: #{tpu_custom_call.1}
  #allocation0 [shape = 'u32[]', space=smem, size = 0x4, offset = 0x4, fixed_abs, tag = 'smem constant byte address 0x4 - core index']
  #allocation1 [shape = 'u32[72,128]{1,0:T(1,128)}', space=vmem, size = 0x9000, scoped, tag = 'internal scratch']
  %s0 = inlined_call_operand.hbm [shape: f32[16,32], index: 0, kind: input, shape index: {}]
  %s1 = inlined_call_operand.hbm [shape: f32[32,96], index: 1, kind: input, shape index: {}]
  %s2 = inlined_call_operand.vmem [shape: f32[1,96], index: 2, kind: input, shape index: {}]
  %s3 = inlined_call_operand.hbm [shape: f32[16,96], index: 3, kind: output, shape index: {}]
  %s4 = sld [smem:[#allocation0]]
  $region30: #{tpu_custom_call.1} parent=0
    _
  %s6 = ssub.s32 1, %s4
  %s7 = scalar_select 0, %s6, %s4
  $region1: #{tpu_custom_call.1} parent=0
    #allocation2 [shape = 'u8[8192]{0}', space=vmem, size = 0x2000, scoped, tag = 'input window, operand 0, single buffered']
    #allocation3 [shape = 's32[1]{0}', space=sflag, size = 0x4, scoped, tag = 'scoped memory for tpu_custom_call.1']
    #allocation4 [shape = 's32[1]{0}', space=sflag, size = 0x4, scoped, tag = 'scoped memory for tpu_custom_call.1']
    #allocation5 [shape = 'u8[16384]{0}', space=vmem, size = 0x4000, scoped, tag = 'input window, operand 1, single buffered']
    #allocation6 [shape = 's32[1]{0}', space=sflag, size = 0x4, scoped, tag = 'scoped memory for tpu_custom_call.1']
    #allocation7 [shape = 'u8[8192]{0}', space=vmem, size = 0x2000, scoped, tag = 'output window, operand 0, single buffered']
    %8 = vsyncpa [#allocation3], 0
    %9 = vsyncpa [#allocation6], 0
    %10 = vsyncpa [#allocation4], 0
    // Predicated region
    $region2: #{tpu_custom_call.1} parent=1 // pred_check
      _
    $region3: #{tpu_custom_call.1} parent=1 // pred_check_branch
      %12 = sbr.rel (0) target = $region5
    $region4: #{tpu_custom_call.1} parent=1 // pred_region
      %14 = vsyncadd [#allocation3], 0
      %s15 = sshll.u32 %s0, 4
      %s16 = int_to_ptr.hbm [resolvable:$true] %s15
      %s17 = sshll.u32 [#allocation2], 4
      %s18 = int_to_ptr.vmem [resolvable:$true] %s17
      %23 = dma.hbm_to_vmem [thread:$0]  %s16, 256, %s18, [#allocation3], 128, 128, 8
    $region5: #{tpu_custom_call.1} parent=1 // pred_fallthru
      _
    // Predicated region
    $region6: #{tpu_custom_call.1} parent=1 // pred_check
      _
    $region7: #{tpu_custom_call.1} parent=1 // pred_check_branch
      %25 = sbr.rel (0) target = $region9
    $region8: #{tpu_custom_call.1} parent=1 // pred_region
      %27 = vsyncadd [#allocation6], 0
      %s28 = sshll.u32 %s1, 4
      %s29 = int_to_ptr.hbm [resolvable:$true] %s28
      %s30 = sshll.u32 [#allocation5], 4
      %s31 = int_to_ptr.vmem [resolvable:$true] %s30
      %36 = dma.hbm_to_vmem [thread:$0]  %s29, 512, %s31, [#allocation6], 128, 128, 8
    $region9: #{tpu_custom_call.1} parent=1 // pred_fallthru
      _
    // Predicated region
    $region10: #{tpu_custom_call.1} parent=1 // pred_check
      _
    $region11: #{tpu_custom_call.1} parent=1 // pred_check_branch
      %38 = sbr.rel (0) target = $region13
    $region12: #{tpu_custom_call.1} parent=1 // pred_region
      _
    $region13: #{tpu_custom_call.1} parent=1 // pred_fallthru
      _
    // Predicated region
    $region14: #{tpu_custom_call.1} parent=1 // pred_check
      _
    $region15: #{tpu_custom_call.1} parent=1 // pred_check_branch
      %40 = sbr.rel (0) target = $region17
    $region16: #{tpu_custom_call.1} parent=1 // pred_region
      %42 = dma.done [#allocation3], 256
    $region17: #{tpu_custom_call.1} parent=1 // pred_fallthru
      _
    // Predicated region
    $region18: #{tpu_custom_call.1} parent=1 // pred_check
      _
    $region19: #{tpu_custom_call.1} parent=1 // pred_check_branch
      %44 = sbr.rel (0) target = $region21
    $region20: #{tpu_custom_call.1} parent=1 // pred_region
      %46 = dma.done [#allocation6], 512
    $region21: #{tpu_custom_call.1} parent=1 // pred_fallthru
      _
    %v47 = vld [vmem:[#allocation2] sm:$0xff]
    %v48 = vld [vmem:[#allocation2 + $0x8] sm:$0xff]
    %v49 = vld [vmem:[#allocation5] sm:$0xff]
    %v50 = vld [vmem:[#allocation5 + $0x8] sm:$0xff]
    %v51 = vld [vmem:[#allocation5 + $0x10] sm:$0xff]
    %v52 = vld [vmem:[#allocation5 + $0x18] sm:$0xff]
    %v53 = vld [vmem:[%s2] sm:$0x1]
    %v55 = vperm.slane %v53, 0
    %vm57 = vcmask 261120
    %v59 = vsel %vm57, %v47, 0
    %v62 = vsel %vm57, %v48, 0
    %64 = vmatpush.msra.mxu0 0.0
    %65 = vmatpush.msra.mxu0 0.0
    %66 = vmatpush.msra.mxu0 0.0
    %67 = vmatpush.msra.mxu0 0.0
    %68 = vmatpush.msra.mxu0 0.0
    %69 = vmatpush.msra.mxu0 0.0
    %70 = vmatpush.msra.mxu0 0.0
    %71 = vmatpush.msra.mxu0 0.0
    %72 = vmatpush.msra.mxu0 0.0
    %73 = vmatpush.msra.mxu0 0.0
    %74 = vmatpush.msra.mxu0 0.0
    %75 = vmatpush.msra.mxu0 0.0
    %76 = vmatpush.msra.mxu0 %v52
    %77 = vmatpush.msra.mxu0 %v51
    %78 = vmatpush.msra.mxu0 %v50
    %79 = vmatpush.msra.mxu0 %v49
    %80 = vmatmul.f32.gmra.mxu0 %v59
    %v81 = vpop.f32.mrf.mxu0
    %v82 = vadd.f32 %v55, %v81
    %83 = vmatmul.f32.gmra.mxu0 %v62
    %v84 = vpop.f32.mrf.mxu0
    %v85 = vadd.f32 %v55, %v84
    %86 = vdwg.mxu0
    %vm87 = vcmask 785408
    %88 = vst.msk [vmem:[#allocation7] sm:$0xff] %vm87, %v82
    %89 = vst.msk [vmem:[#allocation7 + $0x8] sm:$0xff] %vm87, %v85
    // Predicated region
    $region22: #{tpu_custom_call.1} parent=1 // pred_check
      _
    $region23: #{tpu_custom_call.1} parent=1 // pred_check_branch
      %91 = sbr.rel (0) target = $region25
    $region24: #{tpu_custom_call.1} parent=1 // pred_region
      %93 = vsyncadd [#allocation4], 0
      %s94 = sshll.u32 [#allocation7], 4
      %s95 = int_to_ptr.vmem [resolvable:$true] %s94
      %s96 = sshll.u32 %s3, 4
      %s97 = int_to_ptr.hbm [resolvable:$true] %s96
      %102 = dma.vmem_to_hbm [thread:$0]  %s95, 256, %s97, [#allocation4], 128, 128, 8
    $region25: #{tpu_custom_call.1} parent=1 // pred_fallthru
      _
    // Predicated region
    $region26: #{tpu_custom_call.1} parent=1 // pred_check
      _
    $region27: #{tpu_custom_call.1} parent=1 // pred_check_branch
      %104 = sbr.rel (0) target = $region29
    $region28: #{tpu_custom_call.1} parent=1 // pred_region
      %106 = dma.done [#allocation4], 256
    $region29: #{tpu_custom_call.1} parent=1 // pred_fallthru
      _
    %107 = vsyncpa [#allocation3], 1
    %108 = vsyncpa [#allocation6], 1
    %109 = vsyncpa [#allocation4], 1

</llo_original>
